<compile_context>
chip_gen: v5e
topology: v5e:2x2
jax: 0.10.0
libtpu: 0.0.40
codegen_flags: <defaults>
</compile_context>

<pallas_src>
import jax
import jax.numpy as jnp
from jax.experimental import pallas as pl
from jax.experimental.pallas import tpu as pltpu


def _round_up(n, m):
    return ((n + m - 1) // m) * m


def mlp_kernel(x_ref, w1_ref, b1_ref, w2_ref, b2_ref, w3_ref, b3_ref,
               out_ref, h_ref):
    # Layer 1: Linear + ReLU   (B, F) @ (F, H1) -> (B, H1)   [MXU, f32 acc]
    h1 = jnp.dot(x_ref[...], w1_ref[...], preferred_element_type=jnp.float32)
    h1 = jnp.maximum(h1 + b1_ref[...], 0.0)

    # Layer 2: Linear + ReLU   (B, H1) @ (H1, H2) -> (B, H2) [MXU, f32 acc]
    # Cast the LHS to the weight dtype so the bf16 option keeps the second
    # matmul on the native bf16 MXU path (no-op when everything is f32).
    h2 = jnp.dot(h1.astype(w2_ref.dtype), w2_ref[...],
                 preferred_element_type=jnp.float32)
    h2 = jnp.maximum(h2 + b2_ref[...], 0.0)

    # Output head: (B, H2) x (1, H2) -> (B, 1) as a VPU multiply + XLU lane
    # reduction instead of an N=1 MXU matmul.  b3 is a scalar in SMEM.
    out = jnp.sum(h2 * w3_ref[...], axis=-1, keepdims=True) + b3_ref[0, 0]

    h_ref[...] = h2.astype(h_ref.dtype)
    out_ref[...] = out.astype(out_ref.dtype)


def sequence_regression_mlp(x, params, *, row_tile=2048,
                            matmul_dtype=jnp.float32):
    """x: (B, L, A) float32.  Returns (output (B,1), last_hidden (B,H2)).

    matmul_dtype=jnp.bfloat16 casts only the matmul operands (x, w1, w2);
    accumulation, biases, ReLU and the output head stay f32.
    """
    w1, b1, w2, b2, w3, b3 = params
    B = x.shape[0]
    x_flat = x.reshape(B, -1)           # glue: view(B, -1)
    F = x_flat.shape[1]                 # kept un-padded (50)
    H1 = w1.shape[1]
    H2 = w2.shape[1]

    # Matmul operands (optionally bf16); everything element-wise stays f32.
    x_flat = x_flat.astype(matmul_dtype)
    w1_m = w1.astype(matmul_dtype)
    w2_m = w2.astype(matmul_dtype)
    b1_f = b1.reshape(1, H1).astype(jnp.float32)
    b2_f = b2.reshape(1, H2).astype(jnp.float32)
    w3_f = w3.reshape(1, H2).astype(jnp.float32)   # (H2,1) -> (1,H2) row
    b3_s = b3.reshape(1, 1).astype(jnp.float32)    # scalar bias -> SMEM

    vmem = pltpu.MemorySpace.VMEM
    smem = pltpu.MemorySpace.SMEM

    out_shapes = [jax.ShapeDtypeStruct((B, 1), jnp.float32),
                  jax.ShapeDtypeStruct((B, H2), jnp.float32)]

    if B <= row_tile:
        # Small/medium batch: single gridless invocation, whole-array VMEM
        # operands, no pipeline machinery.
        out, h = pl.pallas_call(
            mlp_kernel,
            in_specs=[pl.BlockSpec(memory_space=vmem)] * 6
                     + [pl.BlockSpec(memory_space=smem)],
            out_specs=[pl.BlockSpec(memory_space=vmem),
                       pl.BlockSpec(memory_space=vmem)],
            out_shape=out_shapes,
        )(x_flat, w1_m, b1_f, w2_m, b2_f, w3_f, b3_s)
        return out, h

    # Large batch: tile rows.  Cap the tile so the grid has >= ~4 steps (lets
    # the "parallel" axis shard across both TensorCores on v7x); keep it a
    # multiple of 8.  No host-side row padding: the last partial block's
    # out-of-range writes are masked, and the garbage rows it reads only feed
    # output rows that are never stored (rows are independent).
    tile = min(_round_up(row_tile, 8), max(8, _round_up(pl.cdiv(B, 4), 8)))
    grid = (pl.cdiv(B, tile),)

    def pinned(shape):
        # Constant block index -> weight stays VMEM-resident across steps.
        return pl.BlockSpec(shape, lambda i: (0, 0))

    out, h = pl.pallas_call(
        mlp_kernel,
        grid=grid,
        in_specs=[
            pl.BlockSpec((tile, F), lambda i: (i, 0)),   # x tile (un-padded F)
            pinned((F, H1)),                             # w1 (pinned)
            pinned((1, H1)),                             # b1
            pinned((H1, H2)),                            # w2 (pinned)
            pinned((1, H2)),                             # b2
            pinned((1, H2)),                             # w3 row
            pl.BlockSpec((1, 1), lambda i: (0, 0),
                         memory_space=smem),             # b3 scalar
        ],
        out_specs=[
            pl.BlockSpec((tile, 1), lambda i: (i, 0)),
            pl.BlockSpec((tile, H2), lambda i: (i, 0)),
        ],
        out_shape=out_shapes,
        compiler_params=pltpu.CompilerParams(
            dimension_semantics=("parallel",)),
    )(x_flat, w1_m, b1_f, w2_m, b2_f, w3_f, b3_s)
    return out, h


def init_params(key, input_dim, sequence_length, hidden_sizes):
    """Deterministic init mimicking torch.nn.Linear's U(-1/sqrt(fan_in), ...)."""
    params = []
    in_size = input_dim * sequence_length
    sizes = list(hidden_sizes) + [1]
    keys = jax.random.split(key, 2 * len(sizes))
    for i, out_size in enumerate(sizes):
        bound = 1.0 / (in_size ** 0.5)
        w = jax.random.uniform(keys[2 * i], (in_size, out_size),
                               minval=-bound, maxval=bound, dtype=jnp.float32)
        b = jax.random.uniform(keys[2 * i + 1], (1, out_size),
                               minval=-bound, maxval=bound, dtype=jnp.float32)
        params.extend([w, b])
        in_size = out_size
    return tuple(params)


def reference_forward(x, params):
    """Pure-JAX reference matching the PyTorch forward."""
    w1, b1, w2, b2, w3, b3 = params
    h = x.reshape(x.shape[0], -1)
    h = jnp.maximum(h @ w1 + b1, 0.0)
    h = jnp.maximum(h @ w2 + b2, 0.0)
    out = h @ w3 + b3
    return out, h


if __name__ == "__main__":
    # Module defaults: input_dim=5, sequence_length=10, hidden_sizes=[128, 64]
    input_dim = 5
    sequence_length = 10
    hidden_sizes = [128, 64]

    key = jax.random.PRNGKey(0)
    k_x1, k_x2, k_p = jax.random.split(key, 3)
    params = init_params(k_p, input_dim, sequence_length, hidden_sizes)

    # Case 1: small batch -> gridless single-invocation path.
    batch_small = 8
    x_small = jax.random.normal(
        k_x1, (batch_small, sequence_length, input_dim), dtype=jnp.float32)
    out_s, h_s = jax.block_until_ready(sequence_regression_mlp(x_small, params))
    ref_out_s, ref_h_s = reference_forward(x_small, params)
    assert out_s.shape == (batch_small, 1)
    assert h_s.shape == (batch_small, hidden_sizes[-1])
    assert jnp.allclose(out_s, ref_out_s, atol=1e-4, rtol=1e-4)
    assert jnp.allclose(h_s, ref_h_s, atol=1e-4, rtol=1e-4)

    # Case 2: non-multiple batch with a small forced tile -> tiled "parallel"
    # grid path (exercises partial last block without host-side row padding,
    # weight pinning, and megacore sharding).
    batch_large = 500
    x_large = jax.random.normal(
        k_x2, (batch_large, sequence_length, input_dim), dtype=jnp.float32)
    out_l, h_l = jax.block_until_ready(
        sequence_regression_mlp(x_large, params, row_tile=128))
    ref_out_l, ref_h_l = reference_forward(x_large, params)
    assert out_l.shape == (batch_large, 1)
    assert h_l.shape == (batch_large, hidden_sizes[-1])
    assert jnp.allclose(out_l, ref_out_l, atol=1e-4, rtol=1e-4)
    assert jnp.allclose(h_l, ref_h_l, atol=1e-4, rtol=1e-4)

    # Case 3: optional bf16 matmul-operand path (halves x HBM traffic,
    # f32 accumulate).  Looser tolerance by construction.
    out_b, h_b = jax.block_until_ready(
        sequence_regression_mlp(x_large, params, row_tile=128,
                                matmul_dtype=jnp.bfloat16))
    assert out_b.shape == (batch_large, 1)
    assert h_b.shape == (batch_large, hidden_sizes[-1])
    assert jnp.allclose(out_b, ref_out_l, atol=1e-1, rtol=1e-1)
    assert jnp.allclose(h_b, ref_h_l, atol=1e-1, rtol=1e-1)

    print("KERNEL_OK")
</pallas_src>

<mosaic_0001>
module attributes {stable_mosaic.version = 11 : i64} {
  func.func @mlp_kernel(%arg0: memref<8x50xf32, #tpu.memory_space<vmem>>, %arg1: memref<50x128xf32, #tpu.memory_space<vmem>>, %arg2: memref<1x128xf32, #tpu.memory_space<vmem>>, %arg3: memref<128x64xf32, #tpu.memory_space<vmem>>, %arg4: memref<1x64xf32, #tpu.memory_space<vmem>>, %arg5: memref<1x64xf32, #tpu.memory_space<vmem>>, %arg6: memref<1x1xf32, #tpu.memory_space<smem>>, %arg7: memref<8x1xf32, #tpu.memory_space<vmem>>, %arg8: memref<8x64xf32, #tpu.memory_space<vmem>>) attributes {dimension_semantics = [], scalar_prefetch = 0 : i64, scratch_operands = 0 : i64, tpu.core_type = #tpu.core_type<tc>} {
    %c0 = arith.constant 0 : index
    %c0_0 = arith.constant 0 : index
    %0 = vector.load %arg0[%c0, %c0_0] : memref<8x50xf32, #tpu.memory_space<vmem>>, vector<8x50xf32>
    %c0_1 = arith.constant 0 : index
    %c0_2 = arith.constant 0 : index
    %1 = vector.load %arg1[%c0_1, %c0_2] : memref<50x128xf32, #tpu.memory_space<vmem>>, vector<50x128xf32>
    %cst = arith.constant dense<0.000000e+00> : vector<8x128xf32>
    %2 = tpu.matmul %0, %1, %cst {dimension_numbers = #tpu.dot_dimension_numbers<[1], [0], [0], [1], [0, 0, 1, 1], [], []>} : vector<8x50xf32>, vector<50x128xf32>, vector<8x128xf32> -> vector<8x128xf32>
    %c0_3 = arith.constant 0 : index
    %c0_4 = arith.constant 0 : index
    %3 = vector.load %arg2[%c0_3, %c0_4] : memref<1x128xf32, #tpu.memory_space<vmem>>, vector<1x128xf32>
    %4 = vector.broadcast %3 : vector<1x128xf32> to vector<8x128xf32>
    %5 = arith.addf %2, %4 : vector<8x128xf32>
    %cst_5 = arith.constant 0.000000e+00 : f32
    %6 = vector.broadcast %cst_5 : f32 to vector<8x128xf32>
    %7 = arith.maximumf %5, %6 : vector<8x128xf32>
    %c0_6 = arith.constant 0 : index
    %c0_7 = arith.constant 0 : index
    %8 = vector.load %arg3[%c0_6, %c0_7] : memref<128x64xf32, #tpu.memory_space<vmem>>, vector<128x64xf32>
    %cst_8 = arith.constant dense<0.000000e+00> : vector<8x64xf32>
    %9 = tpu.matmul %7, %8, %cst_8 {dimension_numbers = #tpu.dot_dimension_numbers<[1], [0], [0], [1], [0, 0, 1, 1], [], []>} : vector<8x128xf32>, vector<128x64xf32>, vector<8x64xf32> -> vector<8x64xf32>
    %c0_9 = arith.constant 0 : index
    %c0_10 = arith.constant 0 : index
    %10 = vector.load %arg4[%c0_9, %c0_10] : memref<1x64xf32, #tpu.memory_space<vmem>>, vector<1x64xf32>
    %11 = vector.broadcast %10 : vector<1x64xf32> to vector<8x64xf32>
    %12 = arith.addf %9, %11 : vector<8x64xf32>
    %cst_11 = arith.constant 0.000000e+00 : f32
    %13 = vector.broadcast %cst_11 : f32 to vector<8x64xf32>
    %14 = arith.maximumf %12, %13 : vector<8x64xf32>
    %c0_12 = arith.constant 0 : index
    %c0_13 = arith.constant 0 : index
    %15 = vector.load %arg5[%c0_12, %c0_13] : memref<1x64xf32, #tpu.memory_space<vmem>>, vector<1x64xf32>
    %16 = vector.broadcast %15 : vector<1x64xf32> to vector<8x64xf32>
    %17 = arith.mulf %14, %16 : vector<8x64xf32>
    %cst_14 = arith.constant dense<0.000000e+00> : vector<8xf32>
    %18 = vector.multi_reduction <add>, %17, %cst_14 [1] : vector<8x64xf32> to vector<8xf32>
    %19 = vector.shape_cast %18 : vector<8xf32> to vector<8x1xf32>
    %c0_15 = arith.constant 0 : index
    %c0_16 = arith.constant 0 : index
    %20 = memref.load %arg6[%c0_15, %c0_16] : memref<1x1xf32, #tpu.memory_space<smem>>
    %21 = vector.broadcast %20 : f32 to vector<8x1xf32>
    %22 = arith.addf %19, %21 : vector<8x1xf32>
    %c0_17 = arith.constant 0 : index
    %c0_18 = arith.constant 0 : index
    %23 = vector.load %arg8[%c0_17, %c0_18] : memref<8x64xf32, #tpu.memory_space<vmem>>, vector<8x64xf32>
    tpu.vector_store %arg8[%c0_17, %c0_18], %14 {strides = array<i32>} : memref<8x64xf32, #tpu.memory_space<vmem>>, vector<8x64xf32>,
    %c0_19 = arith.constant 0 : index
    %c0_20 = arith.constant 0 : index
    %24 = vector.load %arg7[%c0_19, %c0_20] : memref<8x1xf32, #tpu.memory_space<vmem>>, vector<8x1xf32>
    tpu.vector_store %arg7[%c0_19, %c0_20], %22 {strides = array<i32>} : memref<8x1xf32, #tpu.memory_space<vmem>>, vector<8x1xf32>,
    return
  }
}

</mosaic_0001>

<llo_original>
// kernel: tpu_custom_call.1
$region0: #{tpu_custom_call.1}
  #allocation0 [shape = 'u32[]', space=smem, size = 0x4, offset = 0x4, fixed_abs, tag = 'smem constant byte address 0x4 - core index']
  #allocation1 [shape = 'u32[72,128]{1,0:T(1,128)}', space=vmem, size = 0x9000, scoped, tag = 'internal scratch']
  #allocation2 [shape = 'f32[1,1]{1,0:T(1,128)S(6)}', space=smem, size = 0x200, scoped, tag = 'scoped memory for tpu_custom_call.1']
  %s0 = inlined_call_operand.vmem [shape: f32[8,50], index: 0, kind: input, shape index: {}]
  %s1 = inlined_call_operand.vmem [shape: f32[50,128], index: 1, kind: input, shape index: {}]
  %s2 = inlined_call_operand.vmem [shape: f32[1,128], index: 2, kind: input, shape index: {}]
  %s3 = inlined_call_operand.vmem [shape: f32[128,64], index: 3, kind: input, shape index: {}]
  %s4 = inlined_call_operand.vmem [shape: f32[1,64], index: 4, kind: input, shape index: {}]
  %s5 = inlined_call_operand.vmem [shape: f32[1,64], index: 5, kind: input, shape index: {}]
  %s6 = inlined_call_operand.<no memory space> [shape: f32[1,1], index: 6, kind: input, shape index: {}]
  %s7 = inlined_call_operand.vmem [shape: f32[8,1], index: 7, kind: output, shape index: {0}]
  %s8 = inlined_call_operand.hbm [shape: f32[8,64], index: 8, kind: output, shape index: {1}]
  %9 = xla_tuple %s7, %s8
  %s10 = sld [smem:[#allocation0]]
  $region46: #{tpu_custom_call.1} parent=0
    _
  %s12 = ssub.s32 1, %s10
  %s13 = scalar_select 0, %s12, %s10
  %14 = sst [smem:[#allocation2]] %s6
  $region1: #{tpu_custom_call.1} parent=0
    #allocation3 [shape = 'u8[4096]{0}', space=vmem, size = 0x1000, scoped, tag = 'output window, operand 1, single buffered']
    #allocation4 [shape = 's32[1]{0}', space=sflag, size = 0x4, scoped, tag = 'scoped memory for tpu_custom_call.1']
    %15 = vsyncpa [#allocation4], 0
    // Predicated region
    $region2: #{tpu_custom_call.1} parent=1 // pred_check
      _
    $region3: #{tpu_custom_call.1} parent=1 // pred_check_branch
      %17 = sbr.rel (0) target = $region5
    $region4: #{tpu_custom_call.1} parent=1 // pred_region
      _
    $region5: #{tpu_custom_call.1} parent=1 // pred_fallthru
      _
    // Predicated region
    $region6: #{tpu_custom_call.1} parent=1 // pred_check
      _
    $region7: #{tpu_custom_call.1} parent=1 // pred_check_branch
      %19 = sbr.rel (0) target = $region9
    $region8: #{tpu_custom_call.1} parent=1 // pred_region
      _
    $region9: #{tpu_custom_call.1} parent=1 // pred_fallthru
      _
    // Predicated region
    $region10: #{tpu_custom_call.1} parent=1 // pred_check
      _
    $region11: #{tpu_custom_call.1} parent=1 // pred_check_branch
      %21 = sbr.rel (0) target = $region13
    $region12: #{tpu_custom_call.1} parent=1 // pred_region
      _
    $region13: #{tpu_custom_call.1} parent=1 // pred_fallthru
      _
    // Predicated region
    $region14: #{tpu_custom_call.1} parent=1 // pred_check
      _
    $region15: #{tpu_custom_call.1} parent=1 // pred_check_branch
      %23 = sbr.rel (0) target = $region17
    $region16: #{tpu_custom_call.1} parent=1 // pred_region
      _
    $region17: #{tpu_custom_call.1} parent=1 // pred_fallthru
      _
    // Predicated region
    $region18: #{tpu_custom_call.1} parent=1 // pred_check
      _
    $region19: #{tpu_custom_call.1} parent=1 // pred_check_branch
      %25 = sbr.rel (0) target = $region21
    $region20: #{tpu_custom_call.1} parent=1 // pred_region
      _
    $region21: #{tpu_custom_call.1} parent=1 // pred_fallthru
      _
    // Predicated region
    $region22: #{tpu_custom_call.1} parent=1 // pred_check
      _
    $region23: #{tpu_custom_call.1} parent=1 // pred_check_branch
      %27 = sbr.rel (0) target = $region25
    $region24: #{tpu_custom_call.1} parent=1 // pred_region
      _
    $region25: #{tpu_custom_call.1} parent=1 // pred_fallthru
      _
    // Predicated region
    $region26: #{tpu_custom_call.1} parent=1 // pred_check
      _
    $region27: #{tpu_custom_call.1} parent=1 // pred_check_branch
      %29 = sbr.rel (0) target = $region29
    $region28: #{tpu_custom_call.1} parent=1 // pred_region
      _
    $region29: #{tpu_custom_call.1} parent=1 // pred_fallthru
      _
    %v30 = vld [vmem:[%s0] sm:$0xff]
    %v31 = vld [vmem:[%s1] sm:$0xff]
    %v32 = vld [vmem:[%s1 + $0x8] sm:$0xff]
    %v33 = vld [vmem:[%s1 + $0x10] sm:$0xff]
    %v34 = vld [vmem:[%s1 + $0x18] sm:$0xff]
    %v35 = vld [vmem:[%s1 + $0x20] sm:$0xff]
    %v36 = vld [vmem:[%s1 + $0x28] sm:$0xff]
    %v37 = vld [vmem:[%s1 + $0x30] sm:$0x3]
    %v38 = vld [vmem:[%s2] sm:$0x1]
    %v40 = vperm.slane %v38, 0
    %vm42 = vcmask 408576
    %v44 = vsel %vm42, %v30, 0
    %vm46 = vcmask 1041408
    %v48 = vsel %vm46, %v37, 0
    %50 = vmatpush.msra.mxu0 0.0
    %51 = vmatpush.msra.mxu0 0.0
    %52 = vmatpush.msra.mxu0 0.0
    %53 = vmatpush.msra.mxu0 0.0
    %54 = vmatpush.msra.mxu0 0.0
    %55 = vmatpush.msra.mxu0 0.0
    %56 = vmatpush.msra.mxu0 0.0
    %57 = vmatpush.msra.mxu0 0.0
    %58 = vmatpush.msra.mxu0 0.0
    %59 = vmatpush.msra.mxu0 %v48
    %60 = vmatpush.msra.mxu0 %v36
    %61 = vmatpush.msra.mxu0 %v35
    %62 = vmatpush.msra.mxu0 %v34
    %63 = vmatpush.msra.mxu0 %v33
    %64 = vmatpush.msra.mxu0 %v32
    %65 = vmatpush.msra.mxu0 %v31
    %66 = vmatmul.f32.gmra.mxu0 %v44
    %v67 = vpop.f32.mrf.mxu0
    %v68 = vadd.f32 %v40, %v67
    %69 = vdwg.mxu0
    %v70 = vmax.f32 %v68, 0.0
    %v71 = vld [vmem:[%s3] sm:$0xff]
    %v72 = vld [vmem:[%s3 + $0x8] sm:$0xff]
    %v73 = vld [vmem:[%s3 + $0x10] sm:$0xff]
    %v74 = vld [vmem:[%s3 + $0x18] sm:$0xff]
    %v75 = vld [vmem:[%s3 + $0x20] sm:$0xff]
    %v76 = vld [vmem:[%s3 + $0x28] sm:$0xff]
    %v77 = vld [vmem:[%s3 + $0x30] sm:$0xff]
    %v78 = vld [vmem:[%s3 + $0x38] sm:$0xff]
    %v79 = vld [vmem:[%s3 + $0x40] sm:$0xff]
    %v80 = vld [vmem:[%s3 + $0x48] sm:$0xff]
    %v81 = vld [vmem:[%s3 + $0x50] sm:$0xff]
    %v82 = vld [vmem:[%s3 + $0x58] sm:$0xff]
    %v83 = vld [vmem:[%s3 + $0x60] sm:$0xff]
    %v84 = vld [vmem:[%s3 + $0x68] sm:$0xff]
    %v85 = vld [vmem:[%s3 + $0x70] sm:$0xff]
    %v86 = vld [vmem:[%s3 + $0x78] sm:$0xff]
    %v87 = vld [vmem:[%s4] sm:$0x1]
    %v89 = vperm.slane %v87, 0
    %91 = vmatpush.msra.mxu0 %v86
    %92 = vmatpush.msra.mxu0 %v85
    %93 = vmatpush.msra.mxu0 %v84
    %94 = vmatpush.msra.mxu0 %v83
    %95 = vmatpush.msra.mxu0 %v82
    %96 = vmatpush.msra.mxu0 %v81
    %97 = vmatpush.msra.mxu0 %v80
    %98 = vmatpush.msra.mxu0 %v79
    %99 = vmatpush.msra.mxu0 %v78
    %100 = vmatpush.msra.mxu0 %v77
    %101 = vmatpush.msra.mxu0 %v76
    %102 = vmatpush.msra.mxu0 %v75
    %103 = vmatpush.msra.mxu0 %v74
    %104 = vmatpush.msra.mxu0 %v73
    %105 = vmatpush.msra.mxu0 %v72
    %106 = vmatpush.msra.mxu0 %v71
    %107 = vmatmul.f32.gmra.mxu0 %v70
    %v108 = vpop.f32.mrf.mxu0
    %v109 = vadd.f32 %v89, %v108
    %110 = vdwg.mxu0
    %v111 = vmax.f32 %v109, 0.0
    %v112 = vld [vmem:[%s5] sm:$0x1]
    %v114 = vperm.slane %v112, 0
    %v116 = vmul.f32 %v111, %v114
    %vm117 = vcmask 523264
    %v118 = vsel %vm117, %v116, 0.0
    %119 = vadd.xlane.f32.xlu0 %v118
    %v120 = vpop.xlane.xlu0 %119
    %s121 = sld [smem:[#allocation2]]
    %v122 = vstv %s121
    %v123 = vadd.f32 %v120, %v122
    %124 = vst.msk [vmem:[#allocation3] sm:$0xff] %vm117, %v111
    %vm125 = vcmask 7168
    %126 = vst.msk [vmem:[%s7] sm:$0xff] %vm125, %v123
    // Predicated region
    $region30: #{tpu_custom_call.1} parent=1 // pred_check
      _
    $region31: #{tpu_custom_call.1} parent=1 // pred_check_branch
      %128 = sbr.rel (0) target = $region33
    $region32: #{tpu_custom_call.1} parent=1 // pred_region
      _
    $region33: #{tpu_custom_call.1} parent=1 // pred_fallthru
      _
    // Predicated region
    $region34: #{tpu_custom_call.1} parent=1 // pred_check
      _
    $region35: #{tpu_custom_call.1} parent=1 // pred_check_branch
      %130 = sbr.rel (0) target = $region37
    $region36: #{tpu_custom_call.1} parent=1 // pred_region
      %132 = vsyncadd [#allocation4], 0
      %s134 = sshll.u32 [#allocation3], 4
      %s135 = int_to_ptr.vmem [resolvable:$true] %s134
      %s136 = sshll.u32 %s8, 4
      %s137 = int_to_ptr.hbm [resolvable:$true] %s136
      %139 = dma.vmem_to_hbm [thread:$0]  %s135, 128, %s137, [#allocation4]
    $region37: #{tpu_custom_call.1} parent=1 // pred_fallthru
      _
    // Predicated region
    $region38: #{tpu_custom_call.1} parent=1 // pred_check
      _
    $region39: #{tpu_custom_call.1} parent=1 // pred_check_branch
      %141 = sbr.rel (0) target = $region41
    $region40: #{tpu_custom_call.1} parent=1 // pred_region
      _
    $region41: #{tpu_custom_call.1} parent=1 // pred_fallthru
      _
    // Predicated region
    $region42: #{tpu_custom_call.1} parent=1 // pred_check
      _
    $region43: #{tpu_custom_call.1} parent=1 // pred_check_branch
      %143 = sbr.rel (0) target = $region45
    $region44: #{tpu_custom_call.1} parent=1 // pred_region
      %145 = dma.done [#allocation4], 128
    $region45: #{tpu_custom_call.1} parent=1 // pred_fallthru
      _
    %146 = vsyncpa [#allocation4], 1

</llo_original>
